<compile_context>
chip_gen: v5e
topology: v5e:2x2
jax: 0.10.0
libtpu: 0.0.40
codegen_flags: <defaults>
</compile_context>

<pallas_src>
import jax
import jax.numpy as jnp
from jax.experimental import pallas as pl
from jax.experimental.pallas import tpu as pltpu

_O_PAD = 128  # lane-dense output width; real logits occupy the first O lanes


def _round_up(n, m):
    return ((n + m - 1) // m) * m


def _fc_head_kernel(x_ref, w1_ref, b1_ref, w2_ref, b2_ref, o_ref):
    # x_ref : (TB, C_in)   bf16  activation tile (streamed, double-buffered)
    # w1_ref: (C_in, H)    bf16  pre-transposed Conv1d(k=1) weight (resident)
    # b1_ref: (1, H)       f32
    # w2_ref: (H, O_PAD)   bf16  pre-transposed, zero-padded Linear weight (resident)
    # b2_ref: (1, O_PAD)   f32
    # o_ref : (TB, O_PAD)  f32
    # Layer 1: pointwise Conv1d == matmul on the MXU (bf16 in, f32 accumulate).
    h = jnp.dot(x_ref[...], w1_ref[...], preferred_element_type=jnp.float32)
    # Bias add + ReLU in f32 on the VPU (v5e has no bf16 VPU path).
    h = jnp.maximum(h + b1_ref[...], 0.0)
    # Layer 2: LastLiner == matmul; feed bf16 to the MXU, accumulate f32.
    out = jnp.dot(h.astype(w2_ref.dtype), w2_ref[...],
                  preferred_element_type=jnp.float32)
    o_ref[...] = (out + b2_ref[...]).astype(o_ref.dtype)


def classifier_fullconnect(x, w1, b1, w2, b2, *, tb=256):
    """Fused ECAPA classifier head.

    x : (B, C_in, 1) f32
    w1: (H, C_in) or (H, C_in, 1)   Conv1d(kernel_size=1) weight
    b1: (H,)
    w2: (O, H)                      Linear weight
    b2: (O,)
    returns (B, O, 1) f32
    """
    B, C_in, T = x.shape
    assert T == 1, "time dim must be 1 (matches LastLiner.squeeze(2) semantics)"
    if w1.ndim == 3:               # accept raw Conv1d weight (H, C_in, 1)
        w1 = w1[:, :, 0]
    H = w1.shape[0]
    O = w2.shape[0]
    assert O <= _O_PAD

    # Batch tile: multiple of 8 sublanes, clamped to the (padded) batch.
    tb = max(8, min(int(tb), _round_up(B, 8)))
    b_pad = _round_up(B, tb)

    # ---- wrapper-side layout plumbing (one-time; constant-folded for static weights) ----
    x2d = x[:, :, 0]                                       # (B, C_in)
    if b_pad != B:
        x2d = jnp.pad(x2d, ((0, b_pad - B), (0, 0)))
    x_bf = x2d.astype(jnp.bfloat16)                        # halve HBM traffic for the dominant stream
    w1t = jnp.transpose(w1).astype(jnp.bfloat16)           # (C_in, H): no in-kernel transpose
    w2t = jnp.zeros((H, _O_PAD), jnp.bfloat16).at[:, :O].set(
        jnp.transpose(w2).astype(jnp.bfloat16))            # (H, 128): lane-dense output path
    b1_2d = b1.reshape(1, H).astype(jnp.float32)
    b2_2d = jnp.zeros((1, _O_PAD), jnp.float32).at[0, :O].set(b2.astype(jnp.float32))

    grid = (b_pad // tb,)

    cost = pl.CostEstimate(
        flops=2 * b_pad * C_in * H + 2 * b_pad * H * _O_PAD,
        transcendentals=0,
        bytes_accessed=(x_bf.size * 2 + w1t.size * 2 + w2t.size * 2
                        + b1_2d.size * 4 + b2_2d.size * 4 + b_pad * _O_PAD * 4),
    )

    out = pl.pallas_call(
        _fc_head_kernel,
        out_shape=jax.ShapeDtypeStruct((b_pad, _O_PAD), jnp.float32),
        grid_spec=pltpu.PrefetchScalarGridSpec(
            num_scalar_prefetch=0,
            grid=grid,
            in_specs=[
                pl.BlockSpec((tb, C_in), lambda i: (i, 0)),    # x: streamed per batch tile
                pl.BlockSpec((C_in, H), lambda i: (0, 0)),     # W1^T: resident
                pl.BlockSpec((1, H), lambda i: (0, 0)),        # b1:   resident
                pl.BlockSpec((H, _O_PAD), lambda i: (0, 0)),   # W2^T: resident (zero-padded)
                pl.BlockSpec((1, _O_PAD), lambda i: (0, 0)),   # b2:   resident (zero-padded)
            ],
            out_specs=pl.BlockSpec((tb, _O_PAD), lambda i: (i, 0)),
        ),
        compiler_params=pltpu.CompilerParams(
            dimension_semantics=("parallel",),                 # shard batch tiles across TCs on v7x
        ),
        cost_estimate=cost,
    )(x_bf, w1t, b1_2d, w2t, b2_2d)

    # Slice away batch padding and the zero-padded logit lanes; restore (B, O, 1).
    return out[:B, :O, None]


def init_params(key, c_in, hidden=192, out=2):
    k1, k2, k3, k4 = jax.random.split(key, 4)
    lim1 = 1.0 / jnp.sqrt(c_in)
    lim2 = 1.0 / jnp.sqrt(hidden)
    w1 = jax.random.uniform(k1, (hidden, c_in), jnp.float32, -lim1, lim1)  # Conv1d weight (k=1 squeezed)
    b1 = jax.random.uniform(k2, (hidden,), jnp.float32, -lim1, lim1)
    w2 = jax.random.uniform(k3, (out, hidden), jnp.float32, -lim2, lim2)   # Linear weight
    b2 = jax.random.uniform(k4, (out,), jnp.float32, -lim2, lim2)
    return w1, b1, w2, b2


if __name__ == "__main__":
    key = jax.random.PRNGKey(0)
    kx, kp = jax.random.split(key)

    # Small synthetic shapes consistent with the module's forward
    # (the real ECAPA head has C_in = 6144; use a small C_in here).
    B, C_in, H, O = 4, 256, 192, 2
    x = jax.random.normal(kx, (B, C_in, 1), jnp.float32)
    w1, b1, w2, b2 = init_params(kp, C_in, hidden=H, out=O)

    y = classifier_fullconnect(x, w1, b1, w2, b2)
    y = jax.block_until_ready(y)
    assert y.shape == (B, O, 1)

    # bf16-consistent reference (kernel feeds bf16 to the MXU, accumulates in f32).
    xb = x[:, :, 0].astype(jnp.bfloat16).astype(jnp.float32)
    w1b = w1.astype(jnp.bfloat16).astype(jnp.float32)
    w2b = w2.astype(jnp.bfloat16).astype(jnp.float32)
    h_ref = jnp.maximum(xb @ w1b.T + b1, 0.0).astype(jnp.bfloat16).astype(jnp.float32)
    ref = h_ref @ w2b.T + b2
    assert jnp.allclose(y[:, :, 0], ref, atol=5e-3, rtol=5e-3)

    print("KERNEL_OK")
</pallas_src>

<mosaic_0001>
module attributes {stable_mosaic.version = 11 : i64} {
  func.func @_fc_head_kernel(%arg0: i32, %arg1: memref<8x256xbf16, #tpu.memory_space<vmem>>, %arg2: memref<256x192xbf16, #tpu.memory_space<vmem>>, %arg3: memref<1x192xf32, #tpu.memory_space<vmem>>, %arg4: memref<192x128xbf16, #tpu.memory_space<vmem>>, %arg5: memref<1x128xf32, #tpu.memory_space<vmem>>, %arg6: memref<8x128xf32, #tpu.memory_space<vmem>>) attributes {dimension_semantics = [#tpu.dimension_semantics<parallel>], iteration_bounds = array<i64: 1>, scalar_prefetch = 0 : i64, scratch_operands = 0 : i64, tpu.core_type = #tpu.core_type<tc>, window_params = [{transform_indices = @transform_0, window_bounds = array<i64: 8, 256>}, {pipeline_mode = #tpu.pipeline_mode<synchronous>, transform_indices = @transform_1, window_bounds = array<i64: 256, 192>}, {pipeline_mode = #tpu.pipeline_mode<synchronous>, transform_indices = @transform_2, window_bounds = array<i64: 1, 192>}, {pipeline_mode = #tpu.pipeline_mode<synchronous>, transform_indices = @transform_3, window_bounds = array<i64: 192, 128>}, {pipeline_mode = #tpu.pipeline_mode<synchronous>, transform_indices = @transform_4, window_bounds = array<i64: 1, 128>}, {transform_indices = @transform_5, window_bounds = array<i64: 8, 128>}]} {
    %c0 = arith.constant 0 : index
    %c0_0 = arith.constant 0 : index
    %0 = vector.load %arg1[%c0, %c0_0] : memref<8x256xbf16, #tpu.memory_space<vmem>>, vector<8x256xbf16>
    %c0_1 = arith.constant 0 : index
    %c0_2 = arith.constant 0 : index
    %1 = vector.load %arg2[%c0_1, %c0_2] : memref<256x192xbf16, #tpu.memory_space<vmem>>, vector<256x192xbf16>
    %cst = arith.constant dense<0.000000e+00> : vector<8x192xf32>
    %2 = tpu.matmul %0, %1, %cst {dimension_numbers = #tpu.dot_dimension_numbers<[1], [0], [0], [1], [0, 0, 1, 1], [], []>} : vector<8x256xbf16>, vector<256x192xbf16>, vector<8x192xf32> -> vector<8x192xf32>
    %c0_3 = arith.constant 0 : index
    %c0_4 = arith.constant 0 : index
    %3 = vector.load %arg3[%c0_3, %c0_4] : memref<1x192xf32, #tpu.memory_space<vmem>>, vector<1x192xf32>
    %4 = vector.broadcast %3 : vector<1x192xf32> to vector<8x192xf32>
    %5 = arith.addf %2, %4 : vector<8x192xf32>
    %cst_5 = arith.constant 0.000000e+00 : f32
    %6 = vector.broadcast %cst_5 : f32 to vector<8x192xf32>
    %7 = arith.maximumf %5, %6 : vector<8x192xf32>
    %8 = arith.truncf %7 : vector<8x192xf32> to vector<8x192xbf16>
    %c0_6 = arith.constant 0 : index
    %c0_7 = arith.constant 0 : index
    %9 = vector.load %arg4[%c0_6, %c0_7] : memref<192x128xbf16, #tpu.memory_space<vmem>>, vector<192x128xbf16>
    %cst_8 = arith.constant dense<0.000000e+00> : vector<8x128xf32>
    %10 = tpu.matmul %8, %9, %cst_8 {dimension_numbers = #tpu.dot_dimension_numbers<[1], [0], [0], [1], [0, 0, 1, 1], [], []>} : vector<8x192xbf16>, vector<192x128xbf16>, vector<8x128xf32> -> vector<8x128xf32>
    %c0_9 = arith.constant 0 : index
    %c0_10 = arith.constant 0 : index
    %11 = vector.load %arg5[%c0_9, %c0_10] : memref<1x128xf32, #tpu.memory_space<vmem>>, vector<1x128xf32>
    %12 = vector.broadcast %11 : vector<1x128xf32> to vector<8x128xf32>
    %13 = arith.addf %10, %12 : vector<8x128xf32>
    %c0_11 = arith.constant 0 : index
    %c0_12 = arith.constant 0 : index
    %14 = vector.load %arg6[%c0_11, %c0_12] : memref<8x128xf32, #tpu.memory_space<vmem>>, vector<8x128xf32>
    tpu.vector_store %arg6[%c0_11, %c0_12], %13 {strides = array<i32>} : memref<8x128xf32, #tpu.memory_space<vmem>>, vector<8x128xf32>,
    return
  }
  func.func @transform_0(%arg0: i32) -> (i32, i32) {
    %c0_i32 = arith.constant 0 : i32
    %c0_i32_0 = arith.constant 0 : i32
    return %arg0, %c0_i32 : i32, i32
  }
  func.func @transform_1(%arg0: i32) -> (i32, i32) {
    %c0_i32 = arith.constant 0 : i32
    %c0_i32_0 = arith.constant 0 : i32
    %c0_i32_1 = arith.constant 0 : i32
    return %c0_i32, %c0_i32_0 : i32, i32
  }
  func.func @transform_2(%arg0: i32) -> (i32, i32) {
    %c0_i32 = arith.constant 0 : i32
    %c0_i32_0 = arith.constant 0 : i32
    %c0_i32_1 = arith.constant 0 : i32
    return %c0_i32, %c0_i32_0 : i32, i32
  }
  func.func @transform_3(%arg0: i32) -> (i32, i32) {
    %c0_i32 = arith.constant 0 : i32
    %c0_i32_0 = arith.constant 0 : i32
    %c0_i32_1 = arith.constant 0 : i32
    return %c0_i32, %c0_i32_0 : i32, i32
  }
  func.func @transform_4(%arg0: i32) -> (i32, i32) {
    %c0_i32 = arith.constant 0 : i32
    %c0_i32_0 = arith.constant 0 : i32
    %c0_i32_1 = arith.constant 0 : i32
    return %c0_i32, %c0_i32_0 : i32, i32
  }
  func.func @transform_5(%arg0: i32) -> (i32, i32) {
    %c0_i32 = arith.constant 0 : i32
    %c0_i32_0 = arith.constant 0 : i32
    return %arg0, %c0_i32 : i32, i32
  }
}

</mosaic_0001>

<llo_original>
// kernel: tpu_custom_call.1
$region0: #{tpu_custom_call.1}
  #allocation0 [shape = 'u32[]', space=smem, size = 0x4, offset = 0x4, fixed_abs, tag = 'smem constant byte address 0x4 - core index']
  #allocation1 [shape = 'u32[72,128]{1,0:T(1,128)}', space=vmem, size = 0x9000, scoped, tag = 'internal scratch']
  %s0 = inlined_call_operand.vmem [shape: bf16[8,256], index: 0, kind: input, shape index: {}]
  %s1 = inlined_call_operand.vmem [shape: bf16[256,192], index: 1, kind: input, shape index: {}]
  %s2 = inlined_call_operand.vmem [shape: f32[1,192], index: 2, kind: input, shape index: {}]
  %s3 = inlined_call_operand.vmem [shape: bf16[192,128], index: 3, kind: input, shape index: {}]
  %s4 = inlined_call_operand.vmem [shape: f32[1,128], index: 4, kind: input, shape index: {}]
  %s5 = inlined_call_operand.hbm [shape: f32[8,128], index: 5, kind: output, shape index: {}]
  %s6 = sld [smem:[#allocation0]]
  $region30: #{tpu_custom_call.1} parent=0
    _
  %s8 = ssub.s32 1, %s6
  %s9 = scalar_select 0, %s8, %s6
  $region1: #{tpu_custom_call.1} parent=0
    #allocation2 [shape = 'u8[4096]{0}', space=vmem, size = 0x1000, scoped, tag = 'output window, operand 0, single buffered']
    #allocation3 [shape = 's32[1]{0}', space=sflag, size = 0x4, scoped, tag = 'scoped memory for tpu_custom_call.1']
    %10 = vsyncpa [#allocation3], 0
    // Predicated region
    $region2: #{tpu_custom_call.1} parent=1 // pred_check
      _
    $region3: #{tpu_custom_call.1} parent=1 // pred_check_branch
      %12 = sbr.rel (0) target = $region5
    $region4: #{tpu_custom_call.1} parent=1 // pred_region
      _
    $region5: #{tpu_custom_call.1} parent=1 // pred_fallthru
      _
    // Predicated region
    $region6: #{tpu_custom_call.1} parent=1 // pred_check
      _
    $region7: #{tpu_custom_call.1} parent=1 // pred_check_branch
      %14 = sbr.rel (0) target = $region9
    $region8: #{tpu_custom_call.1} parent=1 // pred_region
      _
    $region9: #{tpu_custom_call.1} parent=1 // pred_fallthru
      _
    // Predicated region
    $region10: #{tpu_custom_call.1} parent=1 // pred_check
      _
    $region11: #{tpu_custom_call.1} parent=1 // pred_check_branch
      %16 = sbr.rel (0) target = $region13
    $region12: #{tpu_custom_call.1} parent=1 // pred_region
      _
    $region13: #{tpu_custom_call.1} parent=1 // pred_fallthru
      _
    // Predicated region
    $region14: #{tpu_custom_call.1} parent=1 // pred_check
      _
    $region15: #{tpu_custom_call.1} parent=1 // pred_check_branch
      %18 = sbr.rel (0) target = $region17
    $region16: #{tpu_custom_call.1} parent=1 // pred_region
      _
    $region17: #{tpu_custom_call.1} parent=1 // pred_fallthru
      _
    // Predicated region
    $region18: #{tpu_custom_call.1} parent=1 // pred_check
      _
    $region19: #{tpu_custom_call.1} parent=1 // pred_check_branch
      %20 = sbr.rel (0) target = $region21
    $region20: #{tpu_custom_call.1} parent=1 // pred_region
      _
    $region21: #{tpu_custom_call.1} parent=1 // pred_fallthru
      _
    %v22 = vld [vmem:[%s0] sm:$0xff]
    %v23 = vld [vmem:[%s1] sm:$0xff]
    %v24 = vld [vmem:[%s1 + $0x8] sm:$0xff]
    %v25 = vld [vmem:[%s1 + $0x10] sm:$0xff]
    %v26 = vld [vmem:[%s1 + $0x18] sm:$0xff]
    %v27 = vld [vmem:[%s1 + $0x20] sm:$0xff]
    %v28 = vld [vmem:[%s1 + $0x28] sm:$0xff]
    %v29 = vld [vmem:[%s1 + $0x30] sm:$0xff]
    %v30 = vld [vmem:[%s1 + $0x38] sm:$0xff]
    %v31 = vld [vmem:[%s1 + $0x40] sm:$0xff]
    %v32 = vld [vmem:[%s1 + $0x48] sm:$0xff]
    %v33 = vld [vmem:[%s1 + $0x50] sm:$0xff]
    %v34 = vld [vmem:[%s1 + $0x58] sm:$0xff]
    %v35 = vld [vmem:[%s1 + $0x60] sm:$0xff]
    %v36 = vld [vmem:[%s1 + $0x68] sm:$0xff]
    %v37 = vld [vmem:[%s1 + $0x70] sm:$0xff]
    %v38 = vld [vmem:[%s1 + $0x78] sm:$0xff]
    %v39 = vld [vmem:[%s1 + $0x80] sm:$0xff]
    %v40 = vld [vmem:[%s1 + $0x88] sm:$0xff]
    %v41 = vld [vmem:[%s1 + $0x90] sm:$0xff]
    %v42 = vld [vmem:[%s1 + $0x98] sm:$0xff]
    %v43 = vld [vmem:[%s1 + $0xa0] sm:$0xff]
    %v44 = vld [vmem:[%s1 + $0xa8] sm:$0xff]
    %v45 = vld [vmem:[%s1 + $0xb0] sm:$0xff]
    %v46 = vld [vmem:[%s1 + $0xb8] sm:$0xff]
    %v47 = vld [vmem:[%s1 + $0xc0] sm:$0xff]
    %v48 = vld [vmem:[%s1 + $0xc8] sm:$0xff]
    %v49 = vld [vmem:[%s1 + $0xd0] sm:$0xff]
    %v50 = vld [vmem:[%s1 + $0xd8] sm:$0xff]
    %v51 = vld [vmem:[%s1 + $0xe0] sm:$0xff]
    %v52 = vld [vmem:[%s1 + $0xe8] sm:$0xff]
    %v53 = vld [vmem:[%s1 + $0xf0] sm:$0xff]
    %v54 = vld [vmem:[%s1 + $0xf8] sm:$0xff]
    %v55 = vld [vmem:[%s2] sm:$0x3]
    %v57 = vperm.slane %v55, 0
    %v58 = vperm.slane %v55, 1
    %v62 = vunpack.c.l.b16 %v22
    %v63 = vunpack.c.h.b16 %v22
    %v64 = vpack.c.b16 %v62, %v62
    %v65 = vpack.c.b16 %v63, %v63
    %v100 = vunpack.c.l.b16 %v23
    %v101 = vunpack.c.h.b16 %v23
    %v102 = vunpack.c.l.b16 %v24
    %v103 = vunpack.c.h.b16 %v24
    %v104 = vunpack.c.l.b16 %v25
    %v105 = vunpack.c.h.b16 %v25
    %v106 = vunpack.c.l.b16 %v26
    %v107 = vunpack.c.h.b16 %v26
    %v108 = vunpack.c.l.b16 %v27
    %v109 = vunpack.c.h.b16 %v27
    %v110 = vunpack.c.l.b16 %v28
    %v111 = vunpack.c.h.b16 %v28
    %v112 = vunpack.c.l.b16 %v29
    %v113 = vunpack.c.h.b16 %v29
    %v114 = vunpack.c.l.b16 %v30
    %v115 = vunpack.c.h.b16 %v30
    %v116 = vunpack.c.l.b16 %v31
    %v117 = vunpack.c.h.b16 %v31
    %v118 = vunpack.c.l.b16 %v32
    %v119 = vunpack.c.h.b16 %v32
    %v120 = vunpack.c.l.b16 %v33
    %v121 = vunpack.c.h.b16 %v33
    %v122 = vunpack.c.l.b16 %v34
    %v123 = vunpack.c.h.b16 %v34
    %v124 = vunpack.c.l.b16 %v35
    %v125 = vunpack.c.h.b16 %v35
    %v126 = vunpack.c.l.b16 %v36
    %v127 = vunpack.c.h.b16 %v36
    %v128 = vunpack.c.l.b16 %v37
    %v129 = vunpack.c.h.b16 %v37
    %v130 = vunpack.c.l.b16 %v38
    %v131 = vunpack.c.h.b16 %v38
    %v132 = vunpack.c.l.b16 %v39
    %v133 = vunpack.c.h.b16 %v39
    %v134 = vunpack.c.l.b16 %v40
    %v135 = vunpack.c.h.b16 %v40
    %v136 = vunpack.c.l.b16 %v41
    %v137 = vunpack.c.h.b16 %v41
    %v138 = vunpack.c.l.b16 %v42
    %v139 = vunpack.c.h.b16 %v42
    %v140 = vunpack.c.l.b16 %v43
    %v141 = vunpack.c.h.b16 %v43
    %v142 = vunpack.c.l.b16 %v44
    %v143 = vunpack.c.h.b16 %v44
    %v144 = vunpack.c.l.b16 %v45
    %v145 = vunpack.c.h.b16 %v45
    %v146 = vunpack.c.l.b16 %v46
    %v147 = vunpack.c.h.b16 %v46
    %v148 = vunpack.c.l.b16 %v47
    %v149 = vunpack.c.h.b16 %v47
    %v150 = vunpack.c.l.b16 %v48
    %v151 = vunpack.c.h.b16 %v48
    %v152 = vunpack.c.l.b16 %v49
    %v153 = vunpack.c.h.b16 %v49
    %v154 = vunpack.c.l.b16 %v50
    %v155 = vunpack.c.h.b16 %v50
    %v156 = vunpack.c.l.b16 %v51
    %v157 = vunpack.c.h.b16 %v51
    %v158 = vunpack.c.l.b16 %v52
    %v159 = vunpack.c.h.b16 %v52
    %v160 = vunpack.c.l.b16 %v53
    %v161 = vunpack.c.h.b16 %v53
    %v162 = vunpack.c.l.b16 %v54
    %v163 = vunpack.c.h.b16 %v54
    %v164 = vpack.c.b16 %v102, %v100
    %v165 = vpack.c.b16 %v103, %v101
    %v166 = vpack.c.b16 %v106, %v104
    %v167 = vpack.c.b16 %v107, %v105
    %v168 = vpack.c.b16 %v110, %v108
    %v169 = vpack.c.b16 %v111, %v109
    %v170 = vpack.c.b16 %v114, %v112
    %v171 = vpack.c.b16 %v115, %v113
    %v172 = vpack.c.b16 %v118, %v116
    %v173 = vpack.c.b16 %v119, %v117
    %v174 = vpack.c.b16 %v122, %v120
    %v175 = vpack.c.b16 %v123, %v121
    %v176 = vpack.c.b16 %v126, %v124
    %v177 = vpack.c.b16 %v127, %v125
    %v178 = vpack.c.b16 %v130, %v128
    %v179 = vpack.c.b16 %v131, %v129
    %v180 = vpack.c.b16 %v134, %v132
    %v181 = vpack.c.b16 %v135, %v133
    %v182 = vpack.c.b16 %v138, %v136
    %v183 = vpack.c.b16 %v139, %v137
    %v184 = vpack.c.b16 %v142, %v140
    %v185 = vpack.c.b16 %v143, %v141
    %v186 = vpack.c.b16 %v146, %v144
    %v187 = vpack.c.b16 %v147, %v145
    %v188 = vpack.c.b16 %v150, %v148
    %v189 = vpack.c.b16 %v151, %v149
    %v190 = vpack.c.b16 %v154, %v152
    %v191 = vpack.c.b16 %v155, %v153
    %v192 = vpack.c.b16 %v158, %v156
    %v193 = vpack.c.b16 %v159, %v157
    %v194 = vpack.c.b16 %v162, %v160
    %v195 = vpack.c.b16 %v163, %v161
    %228 = vmatpush.bf16.msra.mxu0 %v178
    %229 = vmatpush.bf16.msra.mxu0 %v176
    %230 = vmatpush.bf16.msra.mxu0 %v174
    %231 = vmatpush.bf16.msra.mxu0 %v172
    %232 = vmatpush.bf16.msra.mxu0 %v170
    %233 = vmatpush.bf16.msra.mxu0 %v168
    %234 = vmatpush.bf16.msra.mxu0 %v166
    %235 = vmatpush.bf16.msra.mxu0 %v164
    %236 = vmatmul.bf16.gmra.mxu0 %v64
    %v237 = vpop.f32.mrf.mxu0
    %v238 = vadd.f32 %v57, %v237
    %v239 = vpop.f32.mrf.mxu0
    %240 = vdwg.mxu0
    %241 = vmatpush.bf16.msra.mxu0 %v194
    %242 = vmatpush.bf16.msra.mxu0 %v192
    %243 = vmatpush.bf16.msra.mxu0 %v190
    %244 = vmatpush.bf16.msra.mxu0 %v188
    %245 = vmatpush.bf16.msra.mxu0 %v186
    %246 = vmatpush.bf16.msra.mxu0 %v184
    %247 = vmatpush.bf16.msra.mxu0 %v182
    %248 = vmatpush.bf16.msra.mxu0 %v180
    %249 = vmatmul.bf16.gmra.mxu0 %v65
    %v250 = vpop.f32.mrf.mxu0
    %v251 = vadd.f32 %v238, %v250
    %v252 = vpop.f32.mrf.mxu0
    %253 = vdwg.mxu0
    %254 = vmatpush.bf16.msra.mxu0 %v179
    %255 = vmatpush.bf16.msra.mxu0 %v177
    %256 = vmatpush.bf16.msra.mxu0 %v175
    %257 = vmatpush.bf16.msra.mxu0 %v173
    %258 = vmatpush.bf16.msra.mxu0 %v171
    %259 = vmatpush.bf16.msra.mxu0 %v169
    %260 = vmatpush.bf16.msra.mxu0 %v167
    %261 = vmatpush.bf16.msra.mxu0 %v165
    %262 = vmatmul.bf16.gmra.mxu0 %v64
    %v263 = vpop.f32.mrf.mxu0
    %v264 = vadd.f32 %v58, %v263
    %v265 = vpop.f32.mrf.mxu0
    %266 = vdwg.mxu0
    %267 = vmatpush.bf16.msra.mxu0 %v195
    %268 = vmatpush.bf16.msra.mxu0 %v193
    %269 = vmatpush.bf16.msra.mxu0 %v191
    %270 = vmatpush.bf16.msra.mxu0 %v189
    %271 = vmatpush.bf16.msra.mxu0 %v187
    %272 = vmatpush.bf16.msra.mxu0 %v185
    %273 = vmatpush.bf16.msra.mxu0 %v183
    %274 = vmatpush.bf16.msra.mxu0 %v181
    %275 = vmatmul.bf16.gmra.mxu0 %v65
    %v276 = vpop.f32.mrf.mxu0
    %v277 = vadd.f32 %v264, %v276
    %v278 = vpop.f32.mrf.mxu0
    %279 = vdwg.mxu0
    %v280 = vmax.f32 %v251, 0.0
    %v281 = vmax.f32 %v277, 0.0
    %v282 = vpack.c.bf16 %v280, %v280
    %v283 = vpack.c.bf16 %v281, %v281
    %v284 = vld [vmem:[%s3] sm:$0xf]
    %v285 = vld [vmem:[%s3 + $0x4] sm:$0xf]
    %v286 = vld [vmem:[%s3 + $0x8] sm:$0xf]
    %v287 = vld [vmem:[%s3 + $0xc] sm:$0xf]
    %v288 = vld [vmem:[%s3 + $0x10] sm:$0xf]
    %v289 = vld [vmem:[%s3 + $0x14] sm:$0xf]
    %v290 = vld [vmem:[%s3 + $0x18] sm:$0xf]
    %v291 = vld [vmem:[%s3 + $0x1c] sm:$0xf]
    %v292 = vld [vmem:[%s3 + $0x20] sm:$0xf]
    %v293 = vld [vmem:[%s3 + $0x24] sm:$0xf]
    %v294 = vld [vmem:[%s3 + $0x28] sm:$0xf]
    %v295 = vld [vmem:[%s3 + $0x2c] sm:$0xf]
    %v296 = vld [vmem:[%s3 + $0x30] sm:$0xf]
    %v297 = vld [vmem:[%s3 + $0x34] sm:$0xf]
    %v298 = vld [vmem:[%s3 + $0x38] sm:$0xf]
    %v299 = vld [vmem:[%s3 + $0x3c] sm:$0xf]
    %v300 = vld [vmem:[%s3 + $0x40] sm:$0xf]
    %v301 = vld [vmem:[%s3 + $0x44] sm:$0xf]
    %v302 = vld [vmem:[%s3 + $0x48] sm:$0xf]
    %v303 = vld [vmem:[%s3 + $0x4c] sm:$0xf]
    %v304 = vld [vmem:[%s3 + $0x50] sm:$0xf]
    %v305 = vld [vmem:[%s3 + $0x54] sm:$0xf]
    %v306 = vld [vmem:[%s3 + $0x58] sm:$0xf]
    %v307 = vld [vmem:[%s3 + $0x5c] sm:$0xf]
    %v308 = vld [vmem:[%s4] sm:$0x1]
    %v310 = vperm.slane %v308, 0
    %v336 = vunpack.c.l.b16 %v284
    %v337 = vunpack.c.l.b16 %v285
    %v338 = vunpack.c.l.b16 %v286
    %v339 = vunpack.c.l.b16 %v287
    %v340 = vunpack.c.l.b16 %v288
    %v341 = vunpack.c.l.b16 %v289
    %v342 = vunpack.c.l.b16 %v290
    %v343 = vunpack.c.l.b16 %v291
    %v344 = vunpack.c.l.b16 %v292
    %v345 = vunpack.c.l.b16 %v293
    %v346 = vunpack.c.l.b16 %v294
    %v347 = vunpack.c.l.b16 %v295
    %v348 = vunpack.c.l.b16 %v296
    %v349 = vunpack.c.l.b16 %v297
    %v350 = vunpack.c.l.b16 %v298
    %v351 = vunpack.c.l.b16 %v299
    %v352 = vunpack.c.l.b16 %v300
    %v353 = vunpack.c.l.b16 %v301
    %v354 = vunpack.c.l.b16 %v302
    %v355 = vunpack.c.l.b16 %v303
    %v356 = vunpack.c.l.b16 %v304
    %v357 = vunpack.c.l.b16 %v305
    %v358 = vunpack.c.l.b16 %v306
    %v359 = vunpack.c.l.b16 %v307
    %v360 = vpack.c.b16 %v337, %v336
    %v361 = vpack.c.b16 %v339, %v338
    %v362 = vpack.c.b16 %v341, %v340
    %v363 = vpack.c.b16 %v343, %v342
    %v364 = vpack.c.b16 %v345, %v344
    %v365 = vpack.c.b16 %v347, %v346
    %v366 = vpack.c.b16 %v349, %v348
    %v367 = vpack.c.b16 %v351, %v350
    %v368 = vpack.c.b16 %v353, %v352
    %v369 = vpack.c.b16 %v355, %v354
    %v370 = vpack.c.b16 %v357, %v356
    %v371 = vpack.c.b16 %v359, %v358
    %vm384 = vcmask 523264
    %v386 = vsel %vm384, %v283, 0
    %388 = vmatpush.bf16.msra.mxu0 %v367
    %389 = vmatpush.bf16.msra.mxu0 %v366
    %390 = vmatpush.bf16.msra.mxu0 %v365
    %391 = vmatpush.bf16.msra.mxu0 %v364
    %392 = vmatpush.bf16.msra.mxu0 %v363
    %393 = vmatpush.bf16.msra.mxu0 %v362
    %394 = vmatpush.bf16.msra.mxu0 %v361
    %395 = vmatpush.bf16.msra.mxu0 %v360
    %396 = vmatmul.bf16.gmra.mxu0 %v282
    %v397 = vpop.f32.mrf.mxu0
    %v398 = vadd.f32 %v310, %v397
    %v399 = vpop.f32.mrf.mxu0
    %400 = vdwg.mxu0
    %401 = vmatpush.bf16.msra.mxu0 0
    %402 = vmatpush.bf16.msra.mxu0 0
    %403 = vmatpush.bf16.msra.mxu0 0
    %404 = vmatpush.bf16.msra.mxu0 0
    %405 = vmatpush.bf16.msra.mxu0 %v371
    %406 = vmatpush.bf16.msra.mxu0 %v370
    %407 = vmatpush.bf16.msra.mxu0 %v369
    %408 = vmatpush.bf16.msra.mxu0 %v368
    %409 = vmatmul.bf16.gmra.mxu0 %v386
    %v410 = vpop.f32.mrf.mxu0
    %v411 = vadd.f32 %v398, %v410
    %v412 = vpop.f32.mrf.mxu0
    %413 = vdwg.mxu0
    %414 = vst [vmem:[#allocation2] sm:$0xff] %v411
    // Predicated region
    $region22: #{tpu_custom_call.1} parent=1 // pred_check
      _
    $region23: #{tpu_custom_call.1} parent=1 // pred_check_branch
      %416 = sbr.rel (0) target = $region25
    $region24: #{tpu_custom_call.1} parent=1 // pred_region
      %418 = vsyncadd [#allocation3], 0
      %s420 = sshll.u32 [#allocation2], 4
      %s421 = int_to_ptr.vmem [resolvable:$true] %s420
      %s422 = sshll.u32 %s5, 4
      %s423 = int_to_ptr.hbm [resolvable:$true] %s422
      %425 = dma.vmem_to_hbm [thread:$0]  %s421, 128, %s423, [#allocation3]
    $region25: #{tpu_custom_call.1} parent=1 // pred_fallthru
      _
    // Predicated region
    $region26: #{tpu_custom_call.1} parent=1 // pred_check
      _
    $region27: #{tpu_custom_call.1} parent=1 // pred_check_branch
      %427 = sbr.rel (0) target = $region29
    $region28: #{tpu_custom_call.1} parent=1 // pred_region
      %429 = dma.done [#allocation3], 128
    $region29: #{tpu_custom_call.1} parent=1 // pred_fallthru
      _
    %430 = vsyncpa [#allocation3], 1

</llo_original>
